<compile_context>
chip_gen: v5e
topology: v5e:2x2
jax: 0.10.0
libtpu: 0.0.40
codegen_flags: <defaults>
</compile_context>

<pallas_src>
from functools import partial

import jax
import jax.numpy as jnp
from jax.experimental import pallas as pl
from jax.experimental.pallas import tpu as pltpu


def _round_up(x, m):
    return (x + m - 1) // m * m


# ---------------------------------------------------------------------------
# Fused conv kernel: matmul + BN affine (+ residual) (+ ReLU)
# ---------------------------------------------------------------------------

def _fused_mm_kernel(a_ref, b_ref, s_ref, c_ref, o_ref, *, relu):
    acc = jnp.dot(a_ref[...], b_ref[...], preferred_element_type=jnp.float32)
    y = acc * s_ref[...] + c_ref[...]
    if relu:
        y = jnp.maximum(y, 0.0)
    o_ref[...] = y.astype(o_ref.dtype)


def _fused_mm_res_kernel(a_ref, b_ref, s_ref, c_ref, r_ref, o_ref, *, relu):
    acc = jnp.dot(a_ref[...], b_ref[...], preferred_element_type=jnp.float32)
    y = acc * s_ref[...] + c_ref[...] + r_ref[...].astype(jnp.float32)
    if relu:
        y = jnp.maximum(y, 0.0)
    o_ref[...] = y.astype(o_ref.dtype)


def _pick_tm(m):
    return 256 if m >= 256 else _round_up(m, 16)


def _pick_tn(n):
    if n % 256 == 0:
        return 256
    if n % 128 == 0:
        return 128
    return n  # full-extent block (e.g. 64 or out_size=8) -> no padding


def _fused_matmul(a, b, scale, bias, residual, *, relu, out_dtype):
    """y = act((a @ b) * scale + bias [+ residual]).

    a: (M, K) any float dtype (cast to bf16), b: (Kp, N) bf16 with Kp a
    multiple of 128 and rows [K:Kp) zero.  scale/bias: (N,) f32.
    residual: (M, N) or None.  Single K step (full-K block), no accumulator.
    """
    m, k = a.shape
    kp, n = b.shape
    tm = _pick_tm(m)
    tn = _pick_tn(n)
    mp = _round_up(m, tm)

    a = a.astype(jnp.bfloat16)
    if mp != m or kp != k:
        a = jnp.pad(a, ((0, mp - m), (0, kp - k)))
    s2 = scale.reshape(1, n).astype(jnp.float32)
    c2 = bias.reshape(1, n).astype(jnp.float32)

    in_specs = [
        pl.BlockSpec((tm, kp), lambda i, j: (i, 0)),
        pl.BlockSpec((kp, tn), lambda i, j: (0, j)),
        pl.BlockSpec((1, tn), lambda i, j: (0, j)),
        pl.BlockSpec((1, tn), lambda i, j: (0, j)),
    ]
    args = [a, b.astype(jnp.bfloat16), s2, c2]

    if residual is not None:
        r = residual.astype(jnp.bfloat16)
        if mp != m:
            r = jnp.pad(r, ((0, mp - m), (0, 0)))
        in_specs.append(pl.BlockSpec((tm, tn), lambda i, j: (i, j)))
        args.append(r)
        kern = partial(_fused_mm_res_kernel, relu=relu)
    else:
        kern = partial(_fused_mm_kernel, relu=relu)

    out = pl.pallas_call(
        kern,
        out_shape=jax.ShapeDtypeStruct((mp, n), out_dtype),
        grid=(mp // tm, n // tn),
        in_specs=in_specs,
        out_specs=pl.BlockSpec((tm, tn), lambda i, j: (i, j)),
        compiler_params=pltpu.CompilerParams(
            dimension_semantics=("parallel", "parallel")),
    )(*args)
    return out[:m] if mp != m else out


# ---------------------------------------------------------------------------
# im2col glue + jitted conv wrapper
# ---------------------------------------------------------------------------

def _extract_patches(x, kh, kw, stride, pad, pad_value=0.0):
    n, h, w, c = x.shape
    x = jnp.pad(x, ((0, 0), (pad, pad), (pad, pad), (0, 0)),
                constant_values=pad_value)
    hp, wp = h + 2 * pad, w + 2 * pad
    ho = (hp - kh) // stride + 1
    wo = (wp - kw) // stride + 1
    taps = []
    for i in range(kh):
        for j in range(kw):
            taps.append(x[:, i:i + stride * (ho - 1) + 1:stride,
                          j:j + stride * (wo - 1) + 1:stride, :])
    return jnp.stack(taps, axis=0), ho, wo   # (kh*kw, N, Ho, Wo, C)


@partial(jax.jit, static_argnames=("kh", "kw", "stride", "pad", "relu"))
def _conv_bn_impl(x, w, scale, bias, residual, *, kh, kw, stride, pad, relu):
    """x: NHWC bf16; w: (Kp, Cout) bf16 pre-packed; returns NHWC bf16."""
    n, h, ww, c = x.shape
    if kh == 1 and kw == 1:
        xs = x if stride == 1 else x[:, ::stride, ::stride, :]
        _, ho, wo, _ = xs.shape
        a = xs.reshape(n * ho * wo, c)
    else:
        taps, ho, wo = _extract_patches(x, kh, kw, stride, pad)
        a = jnp.transpose(taps, (1, 2, 3, 0, 4)).reshape(
            n * ho * wo, kh * kw * c)
    res = None if residual is None else residual.reshape(n * ho * wo, -1)
    y = _fused_matmul(a, w, scale, bias, res, relu=relu,
                      out_dtype=jnp.bfloat16)
    return y.reshape(n, ho, wo, -1)


def apply_conv(x, cp, relu=True, residual=None):
    return _conv_bn_impl(x, cp["w"], cp["scale"], cp["bias"], residual,
                         kh=cp["kh"], kw=cp["kw"], stride=cp["stride"],
                         pad=cp["pad"], relu=relu)


# ---------------------------------------------------------------------------
# Max-pool (3x3 / stride 2 / pad 1) and global average pool
# ---------------------------------------------------------------------------

def _max_reduce_kernel(x_ref, o_ref):
    o_ref[...] = jnp.max(x_ref[...], axis=0)


@jax.jit
def maxpool_3x3_s2(x):
    n, h, w, c = x.shape
    taps, ho, wo = _extract_patches(x, 3, 3, 2, 1, pad_value=-jnp.inf)
    t = taps.shape[0]
    flat = taps.reshape(t, -1)                      # (9, N*Ho*Wo*C)
    l = flat.shape[1]
    lp = _round_up(l, 8 * 128)
    if lp != l:
        flat = jnp.pad(flat, ((0, 0), (0, lp - l)), constant_values=-jnp.inf)
    rows = lp // 128                                 # lane-dense slab
    out = pl.pallas_call(
        _max_reduce_kernel,
        out_shape=jax.ShapeDtypeStruct((rows, 128), x.dtype),
        grid=(1,),
        in_specs=[pl.BlockSpec((t, rows, 128), lambda i: (0, 0, 0))],
        out_specs=pl.BlockSpec((rows, 128), lambda i: (0, 0)),
    )(flat.reshape(t, rows, 128))
    out = out.reshape(-1)[:l]
    return out.reshape(n, ho, wo, c)


def _mean_kernel(x_ref, o_ref):
    o_ref[...] = jnp.mean(x_ref[...], axis=1)


@jax.jit
def global_avg_pool(x):
    """x: (N, H, W, C) -> (N, C) f32 (AdaptiveAvgPool2d(1) + flatten)."""
    n, h, w, c = x.shape
    xr = x.reshape(n, h * w, c).astype(jnp.float32)
    return pl.pallas_call(
        _mean_kernel,
        out_shape=jax.ShapeDtypeStruct((n, c), jnp.float32),
        grid=(1,),
        in_specs=[pl.BlockSpec((n, h * w, c), lambda i: (0, 0, 0))],
        out_specs=pl.BlockSpec((n, c), lambda i: (0, 0)),
    )(xr)


@jax.jit
def head_forward(feat, w, scale, bias):
    """1x1 conv head (2048 -> out_size) with bias, on pooled features."""
    return _fused_matmul(feat, w, scale, bias, None, relu=False,
                         out_dtype=jnp.float32)


# ---------------------------------------------------------------------------
# ResNet-152 parameters (synthetic, deterministic)
# ---------------------------------------------------------------------------

EXPANSION = 4
LAYER_CFG = [(64, 3, 1), (128, 8, 2), (256, 36, 2), (512, 3, 2)]  # resnet152
BN_EPS = 1e-5


def _kaiming(key, cout, cin, kh, kw):
    fan_in = cin * kh * kw
    std = (2.0 / fan_in) ** 0.5
    return jax.random.normal(key, (cout, cin, kh, kw), jnp.float32) * std


def _bn_fold(c):
    gamma = jnp.ones((c,), jnp.float32)
    beta = jnp.zeros((c,), jnp.float32)
    mean = jnp.zeros((c,), jnp.float32)
    var = jnp.ones((c,), jnp.float32)
    scale = gamma / jnp.sqrt(var + BN_EPS)
    bias = beta - mean * scale
    return scale, bias


def _conv_param(key, cout, cin, kh, kw, stride, pad):
    w = _kaiming(key, cout, cin, kh, kw)            # PyTorch (Cout,Cin,kh,kw)
    k = kh * kw * cin
    kp = _round_up(k, 128)
    wm = jnp.transpose(w, (2, 3, 1, 0)).reshape(k, cout)    # (K, Cout), tap-major
    wm = jnp.pad(wm, ((0, kp - k), (0, 0))).astype(jnp.bfloat16)
    scale, bias = _bn_fold(cout)
    return {"w": wm, "scale": scale, "bias": bias,
            "kh": kh, "kw": kw, "stride": stride, "pad": pad}


def build_params(key, out_size):
    kidx = [0]

    def nk():
        kidx[0] += 1
        return jax.random.fold_in(key, kidx[0])

    params = {"conv1": _conv_param(nk(), 64, 3, 7, 7, 2, 3)}
    layers = []
    inplanes = 64
    for planes, nblocks, stride in LAYER_CFG:
        blocks = []
        for b in range(nblocks):
            s = stride if b == 0 else 1
            bp = {
                "conv1": _conv_param(nk(), planes, inplanes, 1, 1, 1, 0),
                "conv2": _conv_param(nk(), planes, planes, 3, 3, s, 1),
                "conv3": _conv_param(nk(), planes * EXPANSION, planes, 1, 1, 1, 0),
            }
            if b == 0 and (s != 1 or inplanes != planes * EXPANSION):
                bp["down"] = _conv_param(nk(), planes * EXPANSION, inplanes,
                                         1, 1, s, 0)
            blocks.append(bp)
            inplanes = planes * EXPANSION
        layers.append(blocks)
    params["layers"] = layers

    # head: nn.Conv2d(2048, out_size, 1) with bias
    hw = jax.random.normal(nk(), (out_size, 2048, 1, 1), jnp.float32)
    hw = hw / (2048.0 ** 0.5)
    hb = jax.random.normal(nk(), (out_size,), jnp.float32) / (2048.0 ** 0.5)
    params["head_w"] = jnp.transpose(hw, (2, 3, 1, 0)).reshape(
        2048, out_size).astype(jnp.bfloat16)
    params["head_scale"] = jnp.ones((out_size,), jnp.float32)
    params["head_b"] = hb
    return params


# ---------------------------------------------------------------------------
# Forward pass
# ---------------------------------------------------------------------------

def bottleneck_forward(x, bp):
    identity = x
    if "down" in bp:
        identity = apply_conv(x, bp["down"], relu=False)
    out = apply_conv(x, bp["conv1"], relu=True)
    out = apply_conv(out, bp["conv2"], relu=True)
    # conv3 + BN + residual add + ReLU fused in one kernel
    out = apply_conv(out, bp["conv3"], relu=True, residual=identity)
    return out


def resnet152_forward(image_nchw, params):
    # NCHW -> NHWC, bf16 activations
    x = jnp.transpose(image_nchw, (0, 2, 3, 1)).astype(jnp.bfloat16)
    # stem: conv7x7/s2 + BN + ReLU (fused), then maxpool 3x3/s2
    x = apply_conv(x, params["conv1"], relu=True)
    x = maxpool_3x3_s2(x)
    # residual stages
    for blocks in params["layers"]:
        for bp in blocks:
            x = bottleneck_forward(x, bp)
    # AdaptiveAvgPool2d(1) -> (N, 2048)
    feat = global_avg_pool(x)
    # 1x1 conv head with bias, then implicit squeeze(-1).squeeze(-1)
    y = head_forward(feat, params["head_w"], params["head_scale"],
                     params["head_b"])
    return y


# ---------------------------------------------------------------------------

if __name__ == "__main__":
    out_size = 8
    key = jax.random.PRNGKey(0)
    params = build_params(jax.random.fold_in(key, 1), out_size)
    image = jax.random.normal(jax.random.fold_in(key, 2), (2, 3, 64, 64),
                              jnp.float32)
    y = resnet152_forward(image, params)
    y = jax.block_until_ready(y)
    assert y.shape == (2, out_size), y.shape
    print("KERNEL_OK")
</pallas_src>

<mosaic_0001>
module attributes {stable_mosaic.version = 11 : i64} {
  func.func @_fused_mm_kernel(%arg0: i32, %arg1: i32, %arg2: memref<256x256xbf16, #tpu.memory_space<vmem>>, %arg3: memref<256x64xbf16, #tpu.memory_space<vmem>>, %arg4: memref<1x64xf32, #tpu.memory_space<vmem>>, %arg5: memref<1x64xf32, #tpu.memory_space<vmem>>, %arg6: memref<256x64xbf16, #tpu.memory_space<vmem>>) attributes {dimension_semantics = [#tpu.dimension_semantics<parallel>, #tpu.dimension_semantics<parallel>], iteration_bounds = array<i64: 8, 1>, scalar_prefetch = 0 : i64, scratch_operands = 0 : i64, tpu.core_type = #tpu.core_type<tc>, window_params = [{transform_indices = @transform_0, window_bounds = array<i64: 256, 256>}, {transform_indices = @transform_1, window_bounds = array<i64: 256, 64>}, {transform_indices = @transform_2, window_bounds = array<i64: 1, 64>}, {transform_indices = @transform_3, window_bounds = array<i64: 1, 64>}, {transform_indices = @transform_4, window_bounds = array<i64: 256, 64>}]} {
    %c0 = arith.constant 0 : index
    %c0_0 = arith.constant 0 : index
    %0 = vector.load %arg2[%c0, %c0_0] : memref<256x256xbf16, #tpu.memory_space<vmem>>, vector<256x256xbf16>
    %c0_1 = arith.constant 0 : index
    %c0_2 = arith.constant 0 : index
    %1 = vector.load %arg3[%c0_1, %c0_2] : memref<256x64xbf16, #tpu.memory_space<vmem>>, vector<256x64xbf16>
    %cst = arith.constant dense<0.000000e+00> : vector<256x64xf32>
    %2 = tpu.matmul %0, %1, %cst {dimension_numbers = #tpu.dot_dimension_numbers<[1], [0], [0], [1], [0, 0, 1, 1], [], []>} : vector<256x256xbf16>, vector<256x64xbf16>, vector<256x64xf32> -> vector<256x64xf32>
    %c0_3 = arith.constant 0 : index
    %c0_4 = arith.constant 0 : index
    %3 = vector.load %arg4[%c0_3, %c0_4] : memref<1x64xf32, #tpu.memory_space<vmem>>, vector<1x64xf32>
    %4 = vector.broadcast %3 : vector<1x64xf32> to vector<256x64xf32>
    %5 = arith.mulf %2, %4 : vector<256x64xf32>
    %c0_5 = arith.constant 0 : index
    %c0_6 = arith.constant 0 : index
    %6 = vector.load %arg5[%c0_5, %c0_6] : memref<1x64xf32, #tpu.memory_space<vmem>>, vector<1x64xf32>
    %7 = vector.broadcast %6 : vector<1x64xf32> to vector<256x64xf32>
    %8 = arith.addf %5, %7 : vector<256x64xf32>
    %cst_7 = arith.constant 0.000000e+00 : f32
    %9 = vector.broadcast %cst_7 : f32 to vector<256x64xf32>
    %10 = arith.maximumf %8, %9 : vector<256x64xf32>
    %11 = arith.truncf %10 : vector<256x64xf32> to vector<256x64xbf16>
    %c0_8 = arith.constant 0 : index
    %c0_9 = arith.constant 0 : index
    %12 = vector.load %arg6[%c0_8, %c0_9] : memref<256x64xbf16, #tpu.memory_space<vmem>>, vector<256x64xbf16>
    tpu.vector_store %arg6[%c0_8, %c0_9], %11 {strides = array<i32>} : memref<256x64xbf16, #tpu.memory_space<vmem>>, vector<256x64xbf16>,
    return
  }
  func.func @transform_0(%arg0: i32, %arg1: i32) -> (i32, i32) {
    %c0_i32 = arith.constant 0 : i32
    %c0_i32_0 = arith.constant 0 : i32
    return %arg0, %c0_i32 : i32, i32
  }
  func.func @transform_1(%arg0: i32, %arg1: i32) -> (i32, i32) {
    %c0_i32 = arith.constant 0 : i32
    %c0_i32_0 = arith.constant 0 : i32
    return %c0_i32, %arg1 : i32, i32
  }
  func.func @transform_2(%arg0: i32, %arg1: i32) -> (i32, i32) {
    %c0_i32 = arith.constant 0 : i32
    %c0_i32_0 = arith.constant 0 : i32
    return %c0_i32, %arg1 : i32, i32
  }
  func.func @transform_3(%arg0: i32, %arg1: i32) -> (i32, i32) {
    %c0_i32 = arith.constant 0 : i32
    %c0_i32_0 = arith.constant 0 : i32
    return %c0_i32, %arg1 : i32, i32
  }
  func.func @transform_4(%arg0: i32, %arg1: i32) -> (i32, i32) {
    %c0_i32 = arith.constant 0 : i32
    return %arg0, %arg1 : i32, i32
  }
}

</mosaic_0001>

<llo_original>
// kernel: _conv_bn_impl.1
$region0: #{_conv_bn_impl.1}
  #allocation0 [shape = 'u32[]', space=smem, size = 0x4, offset = 0x4, fixed_abs, tag = 'smem constant byte address 0x4 - core index']
  #allocation1 [shape = 'u32[72,128]{1,0:T(1,128)}', space=vmem, size = 0x9000, scoped, tag = 'internal scratch']
  %s0 = inlined_call_operand.vmem [shape: bf16[2048,256], index: 0, kind: input, shape index: {}]
  %s1 = inlined_call_operand.vmem [shape: bf16[256,64], index: 1, kind: input, shape index: {}]
  %s2 = inlined_call_operand.vmem [shape: f32[1,64], index: 2, kind: input, shape index: {}]
  %s3 = inlined_call_operand.vmem [shape: f32[1,64], index: 3, kind: input, shape index: {}]
  %s4 = inlined_call_operand.hbm [shape: bf16[2048,64], index: 4, kind: output, shape index: {}]
  %s5 = sld [smem:[#allocation0]]
  $region49: #{_conv_bn_impl.1} parent=0
    _
  %s7 = ssub.s32 1, %s5
  %s8 = scalar_select 0, %s7, %s5
  $region1: #{_conv_bn_impl.1} parent=0
    #allocation2 [shape = 'u8[131072]{0}', space=vmem, size = 0x20000, scoped, tag = 'output window, operand 0']
    #allocation3 [shape = 's32[2]{0}', space=sflag, size = 0x8, scoped, tag = 'scoped memory for _conv_bn_impl.1']
    %9 = vsyncpa [#allocation3], 0
    %s10 = scalar_lea.sflag [#allocation3], 1
    %11 = vsyncpa %s10, 0
    loop: start=0, step=1, limit=10
    $region2: #{_conv_bn_impl.1} parent=1 // loop_pre_header
      _
    $region3: #{_conv_bn_impl.1} parent=1 // loop_header
      %s13 = sphi 0, %s17
      %p14 = scmp.ge.s32.totalorder %s13, 10
      %s20 = sphi 0, %s32
      %s21 = sphi 0, %s28
      %s22 = sphi 0, %s20
      %s23 = sphi 0, %s21
      %s24 = sphi 0, %s22
      %s25 = sphi 0, %s23
      %s35 = sphi 0, %s37
      %s38 = sphi 0, %s35
      %s39 = sphi 0, %s38
      %s55 = sphi 0, %s39
      %s61 = sphi 0, %s63
      %s64 = sphi 0, %s61
      %s65 = sphi 0, %s64
      %s81 = sphi 0, %s65
      %s87 = sphi 0, %s89
      %s90 = sphi 0, %s87
      %s91 = sphi 0, %s90
      %s107 = sphi 0, %s91
      %s113 = sphi 0, %s115
      %s116 = sphi 0, %s113
      %s117 = sphi 0, %s116
      %s133 = sphi 0, %s117
      %s141 = sphi 0, %s143
      %s144 = sphi 0, %s141
      %s145 = sphi 0, %s144
      %s161 = sphi 0, %s145
    $region4: #{_conv_bn_impl.1} parent=1 // loop_header_branch
      %16 = sbr.rel (%p14) target = $region8
    $region5: #{_conv_bn_impl.1} parent=1 // loop_body
      %s18 = ssub.s32 %s13, 1
      %s19 = ssub.s32 %s13, 2
      %s26 = sadd.s32 1, %s21
      %p27 = scmp.ge.s32.totalorder %s26, 1
      %s28 = scalar_select %p27, 0, %s26
      %s29 = sadd.s32 1, %s20
      %s30 = scalar_select %p27, %s29, %s20
      %p31 = scmp.ge.s32.totalorder %s30, 8
      %s32 = scalar_select %p31, 0, %s30
      %s33 = ssub.s32 %s20, %s32
      %p34 = scmp.eq.s32.totalorder %s33, 0
      %s36 = sadd.s32 %s35, 1
      %s37 = scalar_select %p34, %s35, %s36
      %p40 = pneg %p34
      %p41 = scmp.eq.s32.totalorder %s13, 7
      %p42 = por %p40, %p41
      %p43 = scmp.ne.s32.totalorder %s35, %s38
      %p44 = scmp.eq.s32.totalorder %s13, 0
      %p45 = por %p43, %p44
      %p46 = scmp.ne.s32.totalorder %s35, %s38
      %p47 = scmp.eq.s32.totalorder %s18, 7
      %p48 = por %p46, %p47
      %p49 = scmp.ne.s32.totalorder %s38, %s39
      %p50 = scmp.eq.s32.totalorder %s18, 0
      %p51 = por %p49, %p50
      %p52 = scmp.ne.s32.totalorder %s38, %s39
      %p53 = scmp.eq.s32.totalorder %s19, 7
      %p54 = por %p52, %p53
      %p56 = scmp.ne.s32.totalorder %s39, %s55
      %p57 = scmp.eq.s32.totalorder %s19, 0
      %p58 = por %p56, %p57
      %s59 = ssub.s32 %s21, %s28
      %p60 = scmp.eq.s32.totalorder %s59, 0
      %s62 = sadd.s32 %s61, 1
      %s63 = scalar_select %p60, %s61, %s62
      %p66 = pneg %p60
      %p67 = scmp.eq.s32.totalorder %s13, 7
      %p68 = por %p66, %p67
      %p69 = scmp.ne.s32.totalorder %s61, %s64
      %p70 = scmp.eq.s32.totalorder %s13, 0
      %p71 = por %p69, %p70
      %p72 = scmp.ne.s32.totalorder %s61, %s64
      %p73 = scmp.eq.s32.totalorder %s18, 7
      %p74 = por %p72, %p73
      %p75 = scmp.ne.s32.totalorder %s64, %s65
      %p76 = scmp.eq.s32.totalorder %s18, 0
      %p77 = por %p75, %p76
      %p78 = scmp.ne.s32.totalorder %s64, %s65
      %p79 = scmp.eq.s32.totalorder %s19, 7
      %p80 = por %p78, %p79
      %p82 = scmp.ne.s32.totalorder %s65, %s81
      %p83 = scmp.eq.s32.totalorder %s19, 0
      %p84 = por %p82, %p83
      %s85 = ssub.s32 %s21, %s28
      %p86 = scmp.eq.s32.totalorder %s85, 0
      %s88 = sadd.s32 %s87, 1
      %s89 = scalar_select %p86, %s87, %s88
      %p92 = pneg %p86
      %p93 = scmp.eq.s32.totalorder %s13, 7
      %p94 = por %p92, %p93
      %p95 = scmp.ne.s32.totalorder %s87, %s90
      %p96 = scmp.eq.s32.totalorder %s13, 0
      %p97 = por %p95, %p96
      %p98 = scmp.ne.s32.totalorder %s87, %s90
      %p99 = scmp.eq.s32.totalorder %s18, 7
      %p100 = por %p98, %p99
      %p101 = scmp.ne.s32.totalorder %s90, %s91
      %p102 = scmp.eq.s32.totalorder %s18, 0
      %p103 = por %p101, %p102
      %p104 = scmp.ne.s32.totalorder %s90, %s91
      %p105 = scmp.eq.s32.totalorder %s19, 7
      %p106 = por %p104, %p105
      %p108 = scmp.ne.s32.totalorder %s91, %s107
      %p109 = scmp.eq.s32.totalorder %s19, 0
      %p110 = por %p108, %p109
      %s111 = ssub.s32 %s21, %s28
      %p112 = scmp.eq.s32.totalorder %s111, 0
      %s114 = sadd.s32 %s113, 1
      %s115 = scalar_select %p112, %s113, %s114
      %p118 = pneg %p112
      %p119 = scmp.eq.s32.totalorder %s13, 7
      %p120 = por %p118, %p119
      %p121 = scmp.ne.s32.totalorder %s113, %s116
      %p122 = scmp.eq.s32.totalorder %s13, 0
      %p123 = por %p121, %p122
      %p124 = scmp.ne.s32.totalorder %s113, %s116
      %p125 = scmp.eq.s32.totalorder %s18, 7
      %p126 = por %p124, %p125
      %p127 = scmp.ne.s32.totalorder %s116, %s117
      %p128 = scmp.eq.s32.totalorder %s18, 0
      %p129 = por %p127, %p128
      %p130 = scmp.ne.s32.totalorder %s116, %s117
      %p131 = scmp.eq.s32.totalorder %s19, 7
      %p132 = por %p130, %p131
      %p134 = scmp.ne.s32.totalorder %s117, %s133
      %p135 = scmp.eq.s32.totalorder %s19, 0
      %p136 = por %p134, %p135
      %s137 = ssub.s32 %s20, %s32
      %s138 = ssub.s32 %s21, %s28
      %s139 = sor.u32 %s137, %s138
      %p140 = scmp.eq.s32.totalorder %s139, 0
      %s142 = sadd.s32 %s141, 1
      %s143 = scalar_select %p140, %s141, %s142
      %p146 = pneg %p140
      %p147 = scmp.eq.s32.totalorder %s13, 7
      %p148 = por %p146, %p147
      %p149 = scmp.ne.s32.totalorder %s141, %s144
      %p150 = scmp.eq.s32.totalorder %s13, 0
      %p151 = por %p149, %p150
      %p152 = scmp.ne.s32.totalorder %s141, %s144
      %p153 = scmp.eq.s32.totalorder %s18, 7
      %p154 = por %p152, %p153
      %p155 = scmp.ne.s32.totalorder %s144, %s145
      %p156 = scmp.eq.s32.totalorder %s18, 0
      %p157 = por %p155, %p156
      %p158 = scmp.ne.s32.totalorder %s144, %s145
      %p159 = scmp.eq.s32.totalorder %s19, 7
      %p160 = por %p158, %p159
      %p162 = scmp.ne.s32.totalorder %s145, %s161
      %p163 = scmp.eq.s32.totalorder %s19, 0
      %p164 = por %p162, %p163
      %p165 = scmp.le.s32.totalorder 1, %s13
      %p166 = scmp.lt.s32.totalorder %s13, 9
      %p167 = pnand %p165, %p166
      %p168 = pneg %p167
      // Predicated region
      $region9: #{_conv_bn_impl.1} parent=5 // pred_check
        _
      $region10: #{_conv_bn_impl.1} parent=5 // pred_check_branch
        %170 = sbr.rel (%p167) target = $region12
      $region11: #{_conv_bn_impl.1} parent=5 // pred_region
        %s171 = ssub.s32 %s13, 1
        // Predicated region
        $region13: #{_conv_bn_impl.1} parent=11 // pred_check
          %p172 = pneg %p77
        $region14: #{_conv_bn_impl.1} parent=11 // pred_check_branch
          %174 = sbr.rel (%p172) target = $region16
        $region15: #{_conv_bn_impl.1} parent=11 // pred_region
          %p175 = scmp.lt.s32.totalorder %s23, 0
          %s176 = scalar_select %p175, %s23, 0
          %s177 = smul.addr %s176, 4
          %s178 = scalar_lea.vmem %s1, %s177
        $region16: #{_conv_bn_impl.1} parent=11 // pred_fallthru
          _
        // Predicated region
        $region17: #{_conv_bn_impl.1} parent=11 // pred_check
          %p179 = pneg %p103
        $region18: #{_conv_bn_impl.1} parent=11 // pred_check_branch
          %181 = sbr.rel (%p179) target = $region20
        $region19: #{_conv_bn_impl.1} parent=11 // pred_region
          %p182 = scmp.lt.s32.totalorder %s23, 0
          %s183 = scalar_select %p182, %s23, 0
          %s184 = scalar_lea.vmem %s2, %s183
        $region20: #{_conv_bn_impl.1} parent=11 // pred_fallthru
          _
        // Predicated region
        $region21: #{_conv_bn_impl.1} parent=11 // pred_check
          %p185 = pneg %p129
        $region22: #{_conv_bn_impl.1} parent=11 // pred_check_branch
          %187 = sbr.rel (%p185) target = $region24
        $region23: #{_conv_bn_impl.1} parent=11 // pred_region
          %p188 = scmp.lt.s32.totalorder %s23, 0
          %s189 = scalar_select %p188, %s23, 0
          %s190 = scalar_lea.vmem %s3, %s189
        $region24: #{_conv_bn_impl.1} parent=11 // pred_fallthru
          _
      $region12: #{_conv_bn_impl.1} parent=5 // pred_fallthru
        _
      %p191 = scmp.lt.s32.totalorder %s13, 8
      // Predicated region
      $region25: #{_conv_bn_impl.1} parent=5 // pred_check
        %p192 = pneg %p191
      $region26: #{_conv_bn_impl.1} parent=5 // pred_check_branch
        %194 = sbr.rel (%p192) target = $region28
      $region27: #{_conv_bn_impl.1} parent=5 // pred_region
        // Predicated region
        $region29: #{_conv_bn_impl.1} parent=27 // pred_check
          %p195 = pneg %p45
        $region30: #{_conv_bn_impl.1} parent=27 // pred_check_branch
          %197 = sbr.rel (%p195) target = $region32
        $region31: #{_conv_bn_impl.1} parent=27 // pred_region
          %s198 = smul.u32 32, %s20
          %p199 = scmp.lt.s32.totalorder %s198, 255
          %s200 = scalar_select %p199, %s198, 255
          %s201 = smul.addr %s200, 2
          %s202 = smul.addr %s201, 4
          %s203 = scalar_lea.vmem %s0, %s202
          %s204 = smul.u32 32, %s20
        $region32: #{_conv_bn_impl.1} parent=27 // pred_fallthru
          _
      $region28: #{_conv_bn_impl.1} parent=5 // pred_fallthru
        _
      %p205 = scmp.le.s32.totalorder 1, %s13
      %p206 = scmp.lt.s32.totalorder %s13, 9
      %p207 = pnand %p205, %p206
      %p208 = pneg %p207
      // Predicated region
      $region33: #{_conv_bn_impl.1} parent=5 // pred_check
        _
      $region34: #{_conv_bn_impl.1} parent=5 // pred_check_branch
        %210 = sbr.rel (%p207) target = $region36
      $region35: #{_conv_bn_impl.1} parent=5 // pred_region
        %s211 = ssub.s32 %s13, 1
        %s212 = smul.u32 32, %s22
        %p213 = scmp.lt.s32.totalorder %s212, 255
        %s214 = scalar_select %p213, %s212, 255
        %s215 = smul.addr %s214, 2
        %s216 = smul.addr %s215, 4
        %s217 = scalar_lea.vmem %s0, %s216
        %p218 = pneg %p51
        %p219 = pneg %p48
        %p220 = scmp.lt.s32.totalorder %s23, 0
        %s221 = scalar_select %p220, %s23, 0
        %s222 = smul.addr %s221, 4
        %s223 = scalar_lea.vmem %s1, %s222
        %p224 = pneg %p77
        %p225 = pneg %p74
        %p226 = scmp.lt.s32.totalorder %s23, 0
        %s227 = scalar_select %p226, %s23, 0
        %s228 = scalar_lea.vmem %s2, %s227
        %p229 = pneg %p103
        %p230 = pneg %p100
        %p231 = scmp.lt.s32.totalorder %s23, 0
        %s232 = scalar_select %p231, %s23, 0
        %s233 = scalar_lea.vmem %s3, %s232
        %p234 = pneg %p129
        %p235 = pneg %p126
        %p236 = pneg %p157
        %p237 = pneg %p154
        %s238 = sand.u32 %s144, 1
        %s239 = scalar_lea.sflag [#allocation3], %s238
        %s240 = sand.u32 %s144, 1
        %s241 = smul.addr %s240, 128
        %s242 = scalar_lea.vmem [#allocation2], %s241
        %s243 = smul.u32 32, %s22
        %p244 = scmp.lt.s32.totalorder %s243, 255
        %s245 = scalar_select %p244, %s243, 255
        %s246 = smul.addr %s245, 2
        %s247 = smul.addr %s246, 4
        %s248 = scalar_lea.vmem %s0, %s247
        %s249 = smul.u32 32, %s22
        %p250 = scmp.lt.s32.totalorder %s23, 0
        %s251 = scalar_select %p250, %s23, 0
        %s252 = smul.addr %s251, 4
        %s253 = scalar_lea.vmem %s1, %s252
        %p254 = scmp.lt.s32.totalorder %s23, 0
        %s255 = scalar_select %p254, %s23, 0
        %s256 = scalar_lea.vmem %s2, %s255
        %p257 = scmp.lt.s32.totalorder %s23, 0
        %s258 = scalar_select %p257, %s23, 0
        %s259 = scalar_lea.vmem %s3, %s258
        %s260 = smul.u32 32, %s22
        %v261 = vld [vmem:[%s248] sm:$0xff]
        %v262 = vld [vmem:[%s248 + $0x8] sm:$0xff]
        %v263 = vld [vmem:[%s248 + $0x10] sm:$0xff]
        %v264 = vld [vmem:[%s248 + $0x18] sm:$0xff]
        %v265 = vld [vmem:[%s248 + $0x20] sm:$0xff]
        %v266 = vld [vmem:[%s248 + $0x28] sm:$0xff]
        %v267 = vld [vmem:[%s248 + $0x30] sm:$0xff]
        %v268 = vld [vmem:[%s248 + $0x38] sm:$0xff]
        %v269 = vld [vmem:[%s248 + $0x40] sm:$0xff]
        %v270 = vld [vmem:[%s248 + $0x48] sm:$0xff]
        %v271 = vld [vmem:[%s248 + $0x50] sm:$0xff]
        %v272 = vld [vmem:[%s248 + $0x58] sm:$0xff]
        %v273 = vld [vmem:[%s248 + $0x60] sm:$0xff]
        %v274 = vld [vmem:[%s248 + $0x68] sm:$0xff]
        %v275 = vld [vmem:[%s248 + $0x70] sm:$0xff]
        %v276 = vld [vmem:[%s248 + $0x78] sm:$0xff]
        %v277 = vld [vmem:[%s248 + $0x80] sm:$0xff]
        %v278 = vld [vmem:[%s248 + $0x88] sm:$0xff]
        %v279 = vld [vmem:[%s248 + $0x90] sm:$0xff]
        %v280 = vld [vmem:[%s248 + $0x98] sm:$0xff]
        %v281 = vld [vmem:[%s248 + $0xa0] sm:$0xff]
        %v282 = vld [vmem:[%s248 + $0xa8] sm:$0xff]
        %v283 = vld [vmem:[%s248 + $0xb0] sm:$0xff]
        %v284 = vld [vmem:[%s248 + $0xb8] sm:$0xff]
        %v285 = vld [vmem:[%s248 + $0xc0] sm:$0xff]
        %v286 = vld [vmem:[%s248 + $0xc8] sm:$0xff]
        %v287 = vld [vmem:[%s248 + $0xd0] sm:$0xff]
        %v288 = vld [vmem:[%s248 + $0xd8] sm:$0xff]
        %v289 = vld [vmem:[%s248 + $0xe0] sm:$0xff]
        %v290 = vld [vmem:[%s248 + $0xe8] sm:$0xff]
        %v291 = vld [vmem:[%s248 + $0xf0] sm:$0xff]
        %v292 = vld [vmem:[%s248 + $0xf8] sm:$0xff]
        %v293 = vld [vmem:[%s253] sm:$0xf]
        %v294 = vld [vmem:[%s253 + $0x4] sm:$0xf]
        %v295 = vld [vmem:[%s253 + $0x8] sm:$0xf]
        %v296 = vld [vmem:[%s253 + $0xc] sm:$0xf]
        %v297 = vld [vmem:[%s253 + $0x10] sm:$0xf]
        %v298 = vld [vmem:[%s253 + $0x14] sm:$0xf]
        %v299 = vld [vmem:[%s253 + $0x18] sm:$0xf]
        %v300 = vld [vmem:[%s253 + $0x1c] sm:$0xf]
        %v301 = vld [vmem:[%s253 + $0x20] sm:$0xf]
        %v302 = vld [vmem:[%s253 + $0x24] sm:$0xf]
        %v303 = vld [vmem:[%s253 + $0x28] sm:$0xf]
        %v304 = vld [vmem:[%s253 + $0x2c] sm:$0xf]
        %v305 = vld [vmem:[%s253 + $0x30] sm:$0xf]
        %v306 = vld [vmem:[%s253 + $0x34] sm:$0xf]
        %v307 = vld [vmem:[%s253 + $0x38] sm:$0xf]
        %v308 = vld [vmem:[%s253 + $0x3c] sm:$0xf]
        %v309 = vld [vmem:[%s253 + $0x40] sm:$0xf]
        %v310 = vld [vmem:[%s253 + $0x44] sm:$0xf]
        %v311 = vld [vmem:[%s253 + $0x48] sm:$0xf]
        %v312 = vld [vmem:[%s253 + $0x4c] sm:$0xf]
        %v313 = vld [vmem:[%s253 + $0x50] sm:$0xf]
        %v314 = vld [vmem:[%s253 + $0x54] sm:$0xf]
        %v315 = vld [vmem:[%s253 + $0x58] sm:$0xf]
        %v316 = vld [vmem:[%s253 + $0x5c] sm:$0xf]
        %v317 = vld [vmem:[%s253 + $0x60] sm:$0xf]
        %v318 = vld [vmem:[%s253 + $0x64] sm:$0xf]
        %v319 = vld [vmem:[%s253 + $0x68] sm:$0xf]
        %v320 = vld [vmem:[%s253 + $0x6c] sm:$0xf]
        %v321 = vld [vmem:[%s253 + $0x70] sm:$0xf]
        %v322 = vld [vmem:[%s253 + $0x74] sm:$0xf]
        %v323 = vld [vmem:[%s253 + $0x78] sm:$0xf]
        %v324 = vld [vmem:[%s253 + $0x7c] sm:$0xf]
        %v357 = vunpack.c.l.b16 %v261
        %v358 = vunpack.c.h.b16 %v261
        %v359 = vunpack.c.l.b16 %v262
        %v360 = vunpack.c.h.b16 %v262
        %v361 = vunpack.c.l.b16 %v263
        %v362 = vunpack.c.h.b16 %v263
        %v363 = vunpack.c.l.b16 %v264
        %v364 = vunpack.c.h.b16 %v264
        %v365 = vunpack.c.l.b16 %v265
        %v366 = vunpack.c.h.b16 %v265
        %v367 = vunpack.c.l.b16 %v266
        %v368 = vunpack.c.h.b16 %v266
        %v369 = vunpack.c.l.b16 %v267
        %v370 = vunpack.c.h.b16 %v267
        %v371 = vunpack.c.l.b16 %v268
        %v372 = vunpack.c.h.b16 %v268
        %v373 = vunpack.c.l.b16 %v269
        %v374 = vunpack.c.h.b16 %v269
        %v375 = vunpack.c.l.b16 %v270
        %v376 = vunpack.c.h.b16 %v270
        %v377 = vunpack.c.l.b16 %v271
        %v378 = vunpack.c.h.b16 %v271
        %v379 = vunpack.c.l.b16 %v272
        %v380 = vunpack.c.h.b16 %v272
        %v381 = vunpack.c.l.b16 %v273
        %v382 = vunpack.c.h.b16 %v273
        %v383 = vunpack.c.l.b16 %v274
        %v384 = vunpack.c.h.b16 %v274
        %v385 = vunpack.c.l.b16 %v275
        %v386 = vunpack.c.h.b16 %v275
        %v387 = vunpack.c.l.b16 %v276
        %v388 = vunpack.c.h.b16 %v276
        %v389 = vunpack.c.l.b16 %v277
        %v390 = vunpack.c.h.b16 %v277
        %v391 = vunpack.c.l.b16 %v278
        %v392 = vunpack.c.h.b16 %v278
        %v393 = vunpack.c.l.b16 %v279
        %v394 = vunpack.c.h.b16 %v279
        %v395 = vunpack.c.l.b16 %v280
        %v396 = vunpack.c.h.b16 %v280
        %v397 = vunpack.c.l.b16 %v281
        %v398 = vunpack.c.h.b16 %v281
        %v399 = vunpack.c.l.b16 %v282
        %v400 = vunpack.c.h.b16 %v282
        %v401 = vunpack.c.l.b16 %v283
        %v402 = vunpack.c.h.b16 %v283
        %v403 = vunpack.c.l.b16 %v284
        %v404 = vunpack.c.h.b16 %v284
        %v405 = vunpack.c.l.b16 %v285
        %v406 = vunpack.c.h.b16 %v285
        %v407 = vunpack.c.l.b16 %v286
        %v408 = vunpack.c.h.b16 %v286
        %v409 = vunpack.c.l.b16 %v287
        %v410 = vunpack.c.h.b16 %v287
        %v411 = vunpack.c.l.b16 %v288
        %v412 = vunpack.c.h.b16 %v288
        %v413 = vunpack.c.l.b16 %v289
        %v414 = vunpack.c.h.b16 %v289
        %v415 = vunpack.c.l.b16 %v290
        %v416 = vunpack.c.h.b16 %v290
        %v417 = vunpack.c.l.b16 %v291
        %v418 = vunpack.c.h.b16 %v291
        %v419 = vunpack.c.l.b16 %v292
        %v420 = vunpack.c.h.b16 %v292
        %v421 = vpack.c.b16 %v359, %v357
        %v422 = vpack.c.b16 %v360, %v358
        %v423 = vpack.c.b16 %v363, %v361
        %v424 = vpack.c.b16 %v364, %v362
        %v425 = vpack.c.b16 %v367, %v365
        %v426 = vpack.c.b16 %v368, %v366
        %v427 = vpack.c.b16 %v371, %v369
        %v428 = vpack.c.b16 %v372, %v370
        %v429 = vpack.c.b16 %v375, %v373
        %v430 = vpack.c.b16 %v376, %v374
        %v431 = vpack.c.b16 %v379, %v377
        %v432 = vpack.c.b16 %v380, %v378
        %v433 = vpack.c.b16 %v383, %v381
        %v434 = vpack.c.b16 %v384, %v382
        %v435 = vpack.c.b16 %v387, %v385
        %v436 = vpack.c.b16 %v388, %v386
        %v437 = vpack.c.b16 %v391, %v389
        %v438 = vpack.c.b16 %v392, %v390
        %v439 = vpack.c.b16 %v395, %v393
        %v440 = vpack.c.b16 %v396, %v394
        %v441 = vpack.c.b16 %v399, %v397
        %v442 = vpack.c.b16 %v400, %v398
        %v443 = vpack.c.b16 %v403, %v401
        %v444 = vpack.c.b16 %v404, %v402
        %v445 = vpack.c.b16 %v407, %v405
        %v446 = vpack.c.b16 %v408, %v406
        %v447 = vpack.c.b16 %v411, %v409
        %v448 = vpack.c.b16 %v412, %v410
        %v449 = vpack.c.b16 %v415, %v413
        %v450 = vpack.c.b16 %v416, %v414
        %v451 = vpack.c.b16 %v419, %v417
        %v452 = vpack.c.b16 %v420, %v418
        %v517 = vunpack.c.l.b16 %v293
        %v518 = vunpack.c.l.b16 %v294
        %v519 = vunpack.c.l.b16 %v295
        %v520 = vunpack.c.l.b16 %v296
        %v521 = vunpack.c.l.b16 %v297
        %v522 = vunpack.c.l.b16 %v298
        %v523 = vunpack.c.l.b16 %v299
        %v524 = vunpack.c.l.b16 %v300
        %v525 = vunpack.c.l.b16 %v301
        %v526 = vunpack.c.l.b16 %v302
        %v527 = vunpack.c.l.b16 %v303
        %v528 = vunpack.c.l.b16 %v304
        %v529 = vunpack.c.l.b16 %v305
        %v530 = vunpack.c.l.b16 %v306
        %v531 = vunpack.c.l.b16 %v307
        %v532 = vunpack.c.l.b16 %v308
        %v533 = vunpack.c.l.b16 %v309
        %v534 = vunpack.c.l.b16 %v310
        %v535 = vunpack.c.l.b16 %v311
        %v536 = vunpack.c.l.b16 %v312
        %v537 = vunpack.c.l.b16 %v313
        %v538 = vunpack.c.l.b16 %v314
        %v539 = vunpack.c.l.b16 %v315
        %v540 = vunpack.c.l.b16 %v316
        %v541 = vunpack.c.l.b16 %v317
        %v542 = vunpack.c.l.b16 %v318
        %v543 = vunpack.c.l.b16 %v319
        %v544 = vunpack.c.l.b16 %v320
        %v545 = vunpack.c.l.b16 %v321
        %v546 = vunpack.c.l.b16 %v322
        %v547 = vunpack.c.l.b16 %v323
        %v548 = vunpack.c.l.b16 %v324
        %v549 = vpack.c.b16 %v518, %v517
        %v550 = vpack.c.b16 %v520, %v519
        %v551 = vpack.c.b16 %v522, %v521
        %v552 = vpack.c.b16 %v524, %v523
        %v553 = vpack.c.b16 %v526, %v525
        %v554 = vpack.c.b16 %v528, %v527
        %v555 = vpack.c.b16 %v530, %v529
        %v556 = vpack.c.b16 %v532, %v531
        %v557 = vpack.c.b16 %v534, %v533
        %v558 = vpack.c.b16 %v536, %v535
        %v559 = vpack.c.b16 %v538, %v537
        %v560 = vpack.c.b16 %v540, %v539
        %v561 = vpack.c.b16 %v542, %v541
        %v562 = vpack.c.b16 %v544, %v543
        %v563 = vpack.c.b16 %v546, %v545
        %v564 = vpack.c.b16 %v548, %v547
        %581 = vmatpush.bf16.msra.mxu0 %v556
        %582 = vmatpush.bf16.msra.mxu0 %v555
        %583 = vmatpush.bf16.msra.mxu0 %v554
        %584 = vmatpush.bf16.msra.mxu0 %v553
        %585 = vmatpush.bf16.msra.mxu0 %v552
        %586 = vmatpush.bf16.msra.mxu0 %v551
        %587 = vmatpush.bf16.msra.mxu0 %v550
        %588 = vmatpush.bf16.msra.mxu0 %v549
        %589 = vmatmul.bf16.gmra.mxu0 %v421
        %v590 = vpop.f32.mrf.mxu0
        %v591 = vadd.f32 0.0, %v590
        %v592 = vpop.f32.mrf.mxu0
        %v593 = vadd.f32 0.0, %v592
        %594 = vmatmul.bf16.gmra.mxu0 %v423
        %v595 = vpop.f32.mrf.mxu0
        %v596 = vadd.f32 0.0, %v595
        %v597 = vpop.f32.mrf.mxu0
        %v598 = vadd.f32 0.0, %v597
        %599 = vmatmul.bf16.gmra.mxu0 %v425
        %v600 = vpop.f32.mrf.mxu0
        %v601 = vadd.f32 0.0, %v600
        %v602 = vpop.f32.mrf.mxu0
        %v603 = vadd.f32 0.0, %v602
        %604 = vmatmul.bf16.gmra.mxu0 %v427
        %v605 = vpop.f32.mrf.mxu0
        %v606 = vadd.f32 0.0, %v605
        %v607 = vpop.f32.mrf.mxu0
        %v608 = vadd.f32 0.0, %v607
        %609 = vmatmul.bf16.gmra.mxu0 %v429
        %v610 = vpop.f32.mrf.mxu0
        %v611 = vadd.f32 0.0, %v610
        %v612 = vpop.f32.mrf.mxu0
        %v613 = vadd.f32 0.0, %v612
        %614 = vmatmul.bf16.gmra.mxu0 %v431
        %v615 = vpop.f32.mrf.mxu0
        %v616 = vadd.f32 0.0, %v615
        %v617 = vpop.f32.mrf.mxu0
        %v618 = vadd.f32 0.0, %v617
        %619 = vmatmul.bf16.gmra.mxu0 %v433
        %v620 = vpop.f32.mrf.mxu0
        %v621 = vadd.f32 0.0, %v620
        %v622 = vpop.f32.mrf.mxu0
        %v623 = vadd.f32 0.0, %v622
        %624 = vmatmul.bf16.gmra.mxu0 %v435
        %v625 = vpop.f32.mrf.mxu0
        %v626 = vadd.f32 0.0, %v625
        %v627 = vpop.f32.mrf.mxu0
        %v628 = vadd.f32 0.0, %v627
        %629 = vmatmul.bf16.gmra.mxu0 %v437
        %v630 = vpop.f32.mrf.mxu0
        %v631 = vadd.f32 0.0, %v630
        %v632 = vpop.f32.mrf.mxu0
        %v633 = vadd.f32 0.0, %v632
        %634 = vmatmul.bf16.gmra.mxu0 %v439
        %v635 = vpop.f32.mrf.mxu0
        %v636 = vadd.f32 0.0, %v635
        %v637 = vpop.f32.mrf.mxu0
        %v638 = vadd.f32 0.0, %v637
        %639 = vmatmul.bf16.gmra.mxu0 %v441
        %v640 = vpop.f32.mrf.mxu0
        %v641 = vadd.f32 0.0, %v640
        %v642 = vpop.f32.mrf.mxu0
        %v643 = vadd.f32 0.0, %v642
        %644 = vmatmul.bf16.gmra.mxu0 %v443
        %v645 = vpop.f32.mrf.mxu0
        %v646 = vadd.f32 0.0, %v645
        %v647 = vpop.f32.mrf.mxu0
        %v648 = vadd.f32 0.0, %v647
        %649 = vmatmul.bf16.gmra.mxu0 %v445
        %v650 = vpop.f32.mrf.mxu0
        %v651 = vadd.f32 0.0, %v650
        %v652 = vpop.f32.mrf.mxu0
        %v653 = vadd.f32 0.0, %v652
        %654 = vmatmul.bf16.gmra.mxu0 %v447
        %v655 = vpop.f32.mrf.mxu0
        %v656 = vadd.f32 0.0, %v655
        %v657 = vpop.f32.mrf.mxu0
        %v658 = vadd.f32 0.0, %v657
        %659 = vmatmul.bf16.gmra.mxu0 %v449
        %v660 = vpop.f32.mrf.mxu0
        %v661 = vadd.f32 0.0, %v660
        %v662 = vpop.f32.mrf.mxu0
        %v663 = vadd.f32 0.0, %v662
        %664 = vmatmul.bf16.gmra.mxu0 %v451
        %v665 = vpop.f32.mrf.mxu0
        %v666 = vadd.f32 0.0, %v665
        %v667 = vpop.f32.mrf.mxu0
        %v668 = vadd.f32 0.0, %v667
        %669 = vdwg.mxu0
        %670 = vmatpush.bf16.msra.mxu0 %v564
        %671 = vmatpush.bf16.msra.mxu0 %v563
        %672 = vmatpush.bf16.msra.mxu0 %v562
        %673 = vmatpush.bf16.msra.mxu0 %v561
        %674 = vmatpush.bf16.msra.mxu0 %v560
        %675 = vmatpush.bf16.msra.mxu0 %v559
        %676 = vmatpush.bf16.msra.mxu0 %v558
        %677 = vmatpush.bf16.msra.mxu0 %v557
        %678 = vmatmul.bf16.gmra.mxu0 %v422
        %v679 = vpop.f32.mrf.mxu0
        %v680 = vadd.f32 %v591, %v679
        %v681 = vpop.f32.mrf.mxu0
        %v682 = vadd.f32 %v593, %v681
        %683 = vmatmul.bf16.gmra.mxu0 %v424
        %v684 = vpop.f32.mrf.mxu0
        %v685 = vadd.f32 %v596, %v684
        %v686 = vpop.f32.mrf.mxu0
        %v687 = vadd.f32 %v598, %v686
        %688 = vmatmul.bf16.gmra.mxu0 %v426
        %v689 = vpop.f32.mrf.mxu0
        %v690 = vadd.f32 %v601, %v689
        %v691 = vpop.f32.mrf.mxu0
        %v692 = vadd.f32 %v603, %v691
        %693 = vmatmul.bf16.gmra.mxu0 %v428
        %v694 = vpop.f32.mrf.mxu0
        %v695 = vadd.f32 %v606, %v694
        %v696 = vpop.f32.mrf.mxu0
        %v697 = vadd.f32 %v608, %v696
        %698 = vmatmul.bf16.gmra.mxu0 %v430
        %v699 = vpop.f32.mrf.mxu0
        %v700 = vadd.f32 %v611, %v699
        %v701 = vpop.f32.mrf.mxu0
        %v702 = vadd.f32 %v613, %v701
        %703 = vmatmul.bf16.gmra.mxu0 %v432
        %v704 = vpop.f32.mrf.mxu0
        %v705 = vadd.f32 %v616, %v704
        %v706 = vpop.f32.mrf.mxu0
        %v707 = vadd.f32 %v618, %v706
        %708 = vmatmul.bf16.gmra.mxu0 %v434
        %v709 = vpop.f32.mrf.mxu0
        %v710 = vadd.f32 %v621, %v709
        %v711 = vpop.f32.mrf.mxu0
        %v712 = vadd.f32 %v623, %v711
        %713 = vmatmul.bf16.gmra.mxu0 %v436
        %v714 = vpop.f32.mrf.mxu0
        %v715 = vadd.f32 %v626, %v714
        %v716 = vpop.f32.mrf.mxu0
        %v717 = vadd.f32 %v628, %v716
        %718 = vmatmul.bf16.gmra.mxu0 %v438
        %v719 = vpop.f32.mrf.mxu0
        %v720 = vadd.f32 %v631, %v719
        %v721 = vpop.f32.mrf.mxu0
        %v722 = vadd.f32 %v633, %v721
        %723 = vmatmul.bf16.gmra.mxu0 %v440
        %v724 = vpop.f32.mrf.mxu0
        %v725 = vadd.f32 %v636, %v724
        %v726 = vpop.f32.mrf.mxu0
        %v727 = vadd.f32 %v638, %v726
        %728 = vmatmul.bf16.gmra.mxu0 %v442
        %v729 = vpop.f32.mrf.mxu0
        %v730 = vadd.f32 %v641, %v729
        %v731 = vpop.f32.mrf.mxu0
        %v732 = vadd.f32 %v643, %v731
        %733 = vmatmul.bf16.gmra.mxu0 %v444
        %v734 = vpop.f32.mrf.mxu0
        %v735 = vadd.f32 %v646, %v734
        %v736 = vpop.f32.mrf.mxu0
        %v737 = vadd.f32 %v648, %v736
        %738 = vmatmul.bf16.gmra.mxu0 %v446
        %v739 = vpop.f32.mrf.mxu0
        %v740 = vadd.f32 %v651, %v739
        %v741 = vpop.f32.mrf.mxu0
        %v742 = vadd.f32 %v653, %v741
        %743 = vmatmul.bf16.gmra.mxu0 %v448
        %v744 = vpop.f32.mrf.mxu0
        %v745 = vadd.f32 %v656, %v744
        %v746 = vpop.f32.mrf.mxu0
        %v747 = vadd.f32 %v658, %v746
        %748 = vmatmul.bf16.gmra.mxu0 %v450
        %v749 = vpop.f32.mrf.mxu0
        %v750 = vadd.f32 %v661, %v749
        %v751 = vpop.f32.mrf.mxu0
        %v752 = vadd.f32 %v663, %v751
        %753 = vmatmul.bf16.gmra.mxu0 %v452
        %v754 = vpop.f32.mrf.mxu0
        %v755 = vadd.f32 %v666, %v754
        %v756 = vpop.f32.mrf.mxu0
        %v757 = vadd.f32 %v668, %v756
        %758 = vdwg.mxu0
        %v759 = vld [vmem:[%s256] sm:$0x1]
        %v761 = vperm.slane %v759, 0
        %v763 = vmul.f32 %v680, %v761
        %v764 = vmul.f32 %v682, %v761
        %v765 = vmul.f32 %v685, %v761
        %v766 = vmul.f32 %v687, %v761
        %v767 = vmul.f32 %v690, %v761
        %v768 = vmul.f32 %v692, %v761
        %v769 = vmul.f32 %v695, %v761
        %v770 = vmul.f32 %v697, %v761
        %v771 = vmul.f32 %v700, %v761
        %v772 = vmul.f32 %v702, %v761
        %v773 = vmul.f32 %v705, %v761
        %v774 = vmul.f32 %v707, %v761
        %v775 = vmul.f32 %v710, %v761
        %v776 = vmul.f32 %v712, %v761
        %v777 = vmul.f32 %v715, %v761
        %v778 = vmul.f32 %v717, %v761
        %v779 = vmul.f32 %v720, %v761
        %v780 = vmul.f32 %v722, %v761
        %v781 = vmul.f32 %v725, %v761
        %v782 = vmul.f32 %v727, %v761
        %v783 = vmul.f32 %v730, %v761
        %v784 = vmul.f32 %v732, %v761
        %v785 = vmul.f32 %v735, %v761
        %v786 = vmul.f32 %v737, %v761
        %v787 = vmul.f32 %v740, %v761
        %v788 = vmul.f32 %v742, %v761
        %v789 = vmul.f32 %v745, %v761
        %v790 = vmul.f32 %v747, %v761
        %v791 = vmul.f32 %v750, %v761
        %v792 = vmul.f32 %v752, %v761
        %v793 = vmul.f32 %v755, %v761
        %v794 = vmul.f32 %v757, %v761
        %v795 = vld [vmem:[%s259] sm:$0x1]
        %v797 = vperm.slane %v795, 0
        %v799 = vadd.f32 %v763, %v797
        %v800 = vadd.f32 %v764, %v797
        %v801 = vadd.f32 %v765, %v797
        %v802 = vadd.f32 %v766, %v797
        %v803 = vadd.f32 %v767, %v797
        %v804 = vadd.f32 %v768, %v797
        %v805 = vadd.f32 %v769, %v797
        %v806 = vadd.f32 %v770, %v797
        %v807 = vadd.f32 %v771, %v797
        %v808 = vadd.f32 %v772, %v797
        %v809 = vadd.f32 %v773, %v797
        %v810 = vadd.f32 %v774, %v797
        %v811 = vadd.f32 %v775, %v797
        %v812 = vadd.f32 %v776, %v797
        %v813 = vadd.f32 %v777, %v797
        %v814 = vadd.f32 %v778, %v797
        %v815 = vadd.f32 %v779, %v797
        %v816 = vadd.f32 %v780, %v797
        %v817 = vadd.f32 %v781, %v797
        %v818 = vadd.f32 %v782, %v797
        %v819 = vadd.f32 %v783, %v797
        %v820 = vadd.f32 %v784, %v797
        %v821 = vadd.f32 %v785, %v797
        %v822 = vadd.f32 %v786, %v797
        %v823 = vadd.f32 %v787, %v797
        %v824 = vadd.f32 %v788, %v797
        %v825 = vadd.f32 %v789, %v797
        %v826 = vadd.f32 %v790, %v797
        %v827 = vadd.f32 %v791, %v797
        %v828 = vadd.f32 %v792, %v797
        %v829 = vadd.f32 %v793, %v797
        %v830 = vadd.f32 %v794, %v797
        %v831 = vmax.f32 %v799, 0.0
        %v832 = vmax.f32 %v800, 0.0
        %v833 = vmax.f32 %v801, 0.0
        %v834 = vmax.f32 %v802, 0.0
        %v835 = vmax.f32 %v803, 0.0
        %v836 = vmax.f32 %v804, 0.0
        %v837 = vmax.f32 %v805, 0.0
        %v838 = vmax.f32 %v806, 0.0
        %v839 = vmax.f32 %v807, 0.0
        %v840 = vmax.f32 %v808, 0.0
        %v841 = vmax.f32 %v809, 0.0
        %v842 = vmax.f32 %v810, 0.0
        %v843 = vmax.f32 %v811, 0.0
        %v844 = vmax.f32 %v812, 0.0
        %v845 = vmax.f32 %v813, 0.0
        %v846 = vmax.f32 %v814, 0.0
        %v847 = vmax.f32 %v815, 0.0
        %v848 = vmax.f32 %v816, 0.0
        %v849 = vmax.f32 %v817, 0.0
        %v850 = vmax.f32 %v818, 0.0
        %v851 = vmax.f32 %v819, 0.0
        %v852 = vmax.f32 %v820, 0.0
        %v853 = vmax.f32 %v821, 0.0
        %v854 = vmax.f32 %v822, 0.0
        %v855 = vmax.f32 %v823, 0.0
        %v856 = vmax.f32 %v824, 0.0
        %v857 = vmax.f32 %v825, 0.0
        %v858 = vmax.f32 %v826, 0.0
        %v859 = vmax.f32 %v827, 0.0
        %v860 = vmax.f32 %v828, 0.0
        %v861 = vmax.f32 %v829, 0.0
        %v862 = vmax.f32 %v830, 0.0
        %v863 = vpack.c.bf16 %v831, %v831
        %v864 = vpack.c.bf16 %v832, %v832
        %v865 = vpack.c.bf16 %v833, %v833
        %v866 = vpack.c.bf16 %v834, %v834
        %v867 = vpack.c.bf16 %v835, %v835
        %v868 = vpack.c.bf16 %v836, %v836
        %v869 = vpack.c.bf16 %v837, %v837
        %v870 = vpack.c.bf16 %v838, %v838
        %v871 = vpack.c.bf16 %v839, %v839
        %v872 = vpack.c.bf16 %v840, %v840
        %v873 = vpack.c.bf16 %v841, %v841
        %v874 = vpack.c.bf16 %v842, %v842
        %v875 = vpack.c.bf16 %v843, %v843
        %v876 = vpack.c.bf16 %v844, %v844
        %v877 = vpack.c.bf16 %v845, %v845
        %v878 = vpack.c.bf16 %v846, %v846
        %v879 = vpack.c.bf16 %v847, %v847
        %v880 = vpack.c.bf16 %v848, %v848
        %v881 = vpack.c.bf16 %v849, %v849
        %v882 = vpack.c.bf16 %v850, %v850
        %v883 = vpack.c.bf16 %v851, %v851
        %v884 = vpack.c.bf16 %v852, %v852
        %v885 = vpack.c.bf16 %v853, %v853
        %v886 = vpack.c.bf16 %v854, %v854
        %v887 = vpack.c.bf16 %v855, %v855
        %v888 = vpack.c.bf16 %v856, %v856
        %v889 = vpack.c.bf16 %v857, %v857
        %v890 = vpack.c.bf16 %v858, %v858
        %v891 = vpack.c.bf16 %v859, %v859
        %v892 = vpack.c.bf16 %v860, %v860
        %v893 = vpack.c.bf16 %v861, %v861
        %v894 = vpack.c.bf16 %v862, %v862
        %vm895 = vcmask 519168
        %896 = vst.msk [vmem:[%s242] sm:$0xf] %vm895, %v863
        %897 = vst.msk [vmem:[%s242 + $0x4] sm:$0xf] %vm895, %v864
        %898 = vst.msk [vmem:[%s242 + $0x8] sm:$0xf] %vm895, %v865
        %899 = vst.msk [vmem:[%s242 + $0xc] sm:$0xf] %vm895, %v866
        %900 = vst.msk [vmem:[%s242 + $0x10] sm:$0xf] %vm895, %v867
        %901 = vst.msk [vmem:[%s242 + $0x14] sm:$0xf] %vm895, %v868
        %902 = vst.msk [vmem:[%s242 + $0x18] sm:$0xf] %vm895, %v869
        %903 = vst.msk [vmem:[%s242 + $0x1c] sm:$0xf] %vm895, %v870
        %904 = vst.msk [vmem:[%s242 + $0x20] sm:$0xf] %vm895, %v871
        %905 = vst.msk [vmem:[%s242 + $0x24] sm:$0xf] %vm895, %v872
        %906 = vst.msk [vmem:[%s242 + $0x28] sm:$0xf] %vm895, %v873
        %907 = vst.msk [vmem:[%s242 + $0x2c] sm:$0xf] %vm895, %v874
        %908 = vst.msk [vmem:[%s242 + $0x30] sm:$0xf] %vm895, %v875
        %909 = vst.msk [vmem:[%s242 + $0x34] sm:$0xf] %vm895, %v876
        %910 = vst.msk [vmem:[%s242 + $0x38] sm:$0xf] %vm895, %v877
        %911 = vst.msk [vmem:[%s242 + $0x3c] sm:$0xf] %vm895, %v878
        %912 = vst.msk [vmem:[%s242 + $0x40] sm:$0xf] %vm895, %v879
        %913 = vst.msk [vmem:[%s242 + $0x44] sm:$0xf] %vm895, %v880
        %914 = vst.msk [vmem:[%s242 + $0x48] sm:$0xf] %vm895, %v881
        %915 = vst.msk [vmem:[%s242 + $0x4c] sm:$0xf] %vm895, %v882
        %916 = vst.msk [vmem:[%s242 + $0x50] sm:$0xf] %vm895, %v883
        %917 = vst.msk [vmem:[%s242 + $0x54] sm:$0xf] %vm895, %v884
        %918 = vst.msk [vmem:[%s242 + $0x58] sm:$0xf] %vm895, %v885
        %919 = vst.msk [vmem:[%s242 + $0x5c] sm:$0xf] %vm895, %v886
        %920 = vst.msk [vmem:[%s242 + $0x60] sm:$0xf] %vm895, %v887
        %921 = vst.msk [vmem:[%s242 + $0x64] sm:$0xf] %vm895, %v888
        %922 = vst.msk [vmem:[%s242 + $0x68] sm:$0xf] %vm895, %v889
        %923 = vst.msk [vmem:[%s242 + $0x6c] sm:$0xf] %vm895, %v890
        %924 = vst.msk [vmem:[%s242 + $0x70] sm:$0xf] %vm895, %v891
        %925 = vst.msk [vmem:[%s242 + $0x74] sm:$0xf] %vm895, %v892
        %926 = vst.msk [vmem:[%s242 + $0x78] sm:$0xf] %vm895, %v893
        %927 = vst.msk [vmem:[%s242 + $0x7c] sm:$0xf] %vm895, %v894
        %s928 = sand.u32 %s144, 1
        %s929 = scalar_lea.sflag [#allocation3], %s928
        %s930 = sand.u32 %s144, 1
        %s931 = smul.addr %s930, 128
        %s932 = scalar_lea.vmem [#allocation2], %s931
        // Predicated region
        $region37: #{_conv_bn_impl.1} parent=35 // pred_check
          %p933 = pneg %p154
        $region38: #{_conv_bn_impl.1} parent=35 // pred_check_branch
          %935 = sbr.rel (%p933) target = $region40
        $region39: #{_conv_bn_impl.1} parent=35 // pred_region
          %s936 = smul.u32 32, %s22
          %938 = vsyncadd %s929, 0
          %s939 = sadd.s32 %s23, %s936
          %s940 = smul.addr %s939, 4
          %s941 = scalar_lea.hbm %s4, %s940
          %s942 = sshll.u32 %s932, 4
          %s943 = int_to_ptr.vmem [resolvable:$true] %s942
          %s944 = sshll.u32 %s941, 4
          %s945 = int_to_ptr.hbm [resolvable:$true] %s944
          %950 = dma.vmem_to_hbm [thread:$0]  %s943, 2048, %s945, %s929, 64, 64, 4
        $region40: #{_conv_bn_impl.1} parent=35 // pred_fallthru
          _
      $region36: #{_conv_bn_impl.1} parent=5 // pred_fallthru
        _
      %p951 = scmp.le.s32.totalorder 2, %s13
      // Predicated region
      $region41: #{_conv_bn_impl.1} parent=5 // pred_check
        %p952 = pneg %p951
      $region42: #{_conv_bn_impl.1} parent=5 // pred_check_branch
        %954 = sbr.rel (%p952) target = $region44
      $region43: #{_conv_bn_impl.1} parent=5 // pred_region
        %s955 = ssub.s32 %s13, 2
        // Predicated region
        $region45: #{_conv_bn_impl.1} parent=43 // pred_check
          %p956 = pneg %p160
        $region46: #{_conv_bn_impl.1} parent=43 // pred_check_branch
          %958 = sbr.rel (%p956) target = $region48
        $region47: #{_conv_bn_impl.1} parent=43 // pred_region
          %s959 = sand.u32 %s145, 1
          %s960 = scalar_lea.sflag [#allocation3], %s959
          %s961 = sand.u32 %s145, 1
          %s962 = smul.addr %s961, 128
          %s963 = scalar_lea.vmem [#allocation2], %s962
          %965 = dma.done %s960, 2048
        $region48: #{_conv_bn_impl.1} parent=43 // pred_fallthru
          _
      $region44: #{_conv_bn_impl.1} parent=5 // pred_fallthru
        _
    $region6: #{_conv_bn_impl.1} parent=1 // loop_footer
      %s17 = sadd.s32 1, %s13
    $region7: #{_conv_bn_impl.1} parent=1 // loop_footer_branch
      %12 = sbr.rel target = $region3
    $region8: #{_conv_bn_impl.1} parent=1 // loop_exit
      _
    %966 = vsyncpa [#allocation3], 1
    %s967 = scalar_lea.sflag [#allocation3], 1
    %968 = vsyncpa %s967, 1

</llo_original>
